<compile_context>
chip_gen: v7x
topology: tpu7x:2x2x1
jax: 0.10.0
libtpu: 0.0.40
codegen_flags: <defaults>
</compile_context>

<pallas_src>
import functools

import jax
import jax.numpy as jnp
from jax import lax
from jax.experimental import pallas as pl
from jax.experimental.pallas import tpu as pltpu


def _round_up(x, m):
    return ((x + m - 1) // m) * m


def _kb_kernel(x_ref, w_ref, w2_ref, out_ref, *, threshold):
    # x_ref : (TN, E) word-output row tile
    # w_ref : (K, E)  op embeddings (resident)
    # w2_ref: (1, K)  precomputed ||w||^2 (resident)
    # out   : (TN, K) thresholded softmax probabilities
    x = x_ref[...]                                    # f32 (TN, E)
    w = w_ref[...]                                    # f32 (K, E)
    w2 = w2_ref[...]                                  # f32 (1, K)

    # ||x||^2 per row
    x2 = jnp.sum(x * x, axis=-1, keepdims=True)       # (TN, 1)

    # x @ w^T without materializing the transpose: contract E on both sides.
    xw = lax.dot_general(
        x, w,
        dimension_numbers=(((1,), (1,)), ((), ())),
        preferred_element_type=jnp.float32,
    )                                                  # (TN, K)

    sq = jnp.maximum(x2 + w2 - 2.0 * xw, 0.0)          # squared L2 distances
    dis = -jnp.sqrt(sq)                                # negative L2 distance

    # numerically stable softmax over K
    m = jnp.max(dis, axis=-1, keepdims=True)
    e = jnp.exp(dis - m)
    denom = jnp.sum(e, axis=-1, keepdims=True)
    prob = e * pl.reciprocal(denom, approx=True)       # EUP vrcp

    # masked_fill(prob < threshold, 0)
    out_ref[...] = jnp.where(prob < threshold, 0.0, prob).astype(out_ref.dtype)


def knowledge_base_forward(word_output, op_embeddings, op_threshold=0.5,
                           row_tile=512):
    """word_output: (B, S, E) f32, op_embeddings: (K, E) f32 -> (B, S, K) f32."""
    B, S, E = word_output.shape
    K = op_embeddings.shape[0]
    N = B * S

    # Row tile: multiple of 8 (sublane), capped so double-buffered tiles stay
    # tiny in VMEM on every chip generation (v5e 16 MiB scoped default incl.).
    TN = min(row_tile, _round_up(N, 8))
    Np = _round_up(N, TN)

    x = word_output.reshape(N, E).astype(jnp.float32)
    if Np != N:
        x = jnp.pad(x, ((0, Np - N), (0, 0)))          # zero rows -> valid softmax
    w = op_embeddings.astype(jnp.float32)
    w2 = jnp.sum(w * w, axis=-1)[None, :]              # (1, K), hoisted once

    out = pl.pallas_call(
        functools.partial(_kb_kernel, threshold=op_threshold),
        out_shape=jax.ShapeDtypeStruct((Np, K), jnp.float32),
        grid=(Np // TN,),
        in_specs=[
            pl.BlockSpec((TN, E), lambda i: (i, 0)),   # streamed row tiles
            pl.BlockSpec((K, E), lambda i: (0, 0)),    # resident weights
            pl.BlockSpec((1, K), lambda i: (0, 0)),    # resident ||w||^2
        ],
        out_specs=pl.BlockSpec((TN, K), lambda i: (i, 0)),
        compiler_params=pltpu.CompilerParams(
            dimension_semantics=("parallel",)),
    )(x, w, w2)

    if Np != N:
        out = out[:N]
    return out.reshape(B, S, K)


def reference_forward(word_output, op_embeddings, op_threshold=0.5):
    """Pure-JAX reference matching the PyTorch forward exactly."""
    diff = word_output[..., None, :] - op_embeddings[None, None, :, :]
    dis = -jnp.sqrt(jnp.sum(diff * diff, axis=-1))
    soft = jax.nn.softmax(dis, axis=-1)
    return soft, jnp.where(soft < op_threshold, 0.0, soft)


if __name__ == "__main__":
    key = jax.random.PRNGKey(0)
    k_embed, k_word = jax.random.split(key)

    # Module setup (deterministic, synthetic):
    vocab_size = 20          # size of the embedding table
    embed_size = 32          # embed_model.embedding_dim
    op_size = 8              # len(op_set)
    batch, seq = 2, 8
    op_threshold = 0.5

    # embed_model: a (vocab_size, embed_size) embedding table
    embed_table = jax.random.normal(k_embed, (vocab_size, embed_size),
                                    dtype=jnp.float32)
    # vocab_dict[token] for the op tokens -> deterministic ids
    op_vocab = jnp.arange(op_size, dtype=jnp.int32) * 2 + 1   # ids 1,3,...,15
    # op_init_embedding = embed_model(op_vocab)  (glue: gather in plain JAX)
    op_init_embedding = jnp.take(embed_table, op_vocab, axis=0)  # (K, E)

    # word_output: (B, S, E)
    word_output = jax.random.normal(k_word, (batch, seq, embed_size),
                                    dtype=jnp.float32)

    prob = knowledge_base_forward(word_output, op_init_embedding, op_threshold)
    prob = jax.block_until_ready(prob)

    soft_ref, ref = reference_forward(word_output, op_init_embedding,
                                      op_threshold)
    assert prob.shape == (batch, seq, op_size)
    assert bool(jnp.all(jnp.isfinite(prob)))

    # approx=True reciprocal (~1e-3 rel err) can flip the threshold decision
    # only for probabilities essentially AT the threshold; skip that sliver.
    near_thresh = jnp.abs(soft_ref - op_threshold) < 5e-3
    ok = jnp.where(near_thresh, True, jnp.abs(prob - ref) <= 2e-3)
    assert bool(jnp.all(ok)), "mismatch vs reference"

    print("KERNEL_OK")
</pallas_src>

<mosaic_0001>
module attributes {stable_mosaic.version = 11 : i64} {
  func.func @_kb_kernel(%arg0: i32, %arg1: memref<16x32xf32, #tpu.memory_space<vmem>>, %arg2: memref<8x32xf32, #tpu.memory_space<vmem>>, %arg3: memref<1x8xf32, #tpu.memory_space<vmem>>, %arg4: memref<16x8xf32, #tpu.memory_space<vmem>>) attributes {dimension_semantics = [#tpu.dimension_semantics<parallel>], iteration_bounds = array<i64: 1>, scalar_prefetch = 0 : i64, scratch_operands = 0 : i64, tpu.core_type = #tpu.core_type<tc>, window_params = [{transform_indices = @transform_0, window_bounds = array<i64: 16, 32>}, {pipeline_mode = #tpu.pipeline_mode<synchronous>, transform_indices = @transform_1, window_bounds = array<i64: 8, 32>}, {pipeline_mode = #tpu.pipeline_mode<synchronous>, transform_indices = @transform_2, window_bounds = array<i64: 1, 8>}, {transform_indices = @transform_3, window_bounds = array<i64: 16, 8>}]} {
    %c0 = arith.constant 0 : index
    %c0_0 = arith.constant 0 : index
    %0 = vector.load %arg1[%c0, %c0_0] : memref<16x32xf32, #tpu.memory_space<vmem>>, vector<16x32xf32>
    %c0_1 = arith.constant 0 : index
    %c0_2 = arith.constant 0 : index
    %1 = vector.load %arg2[%c0_1, %c0_2] : memref<8x32xf32, #tpu.memory_space<vmem>>, vector<8x32xf32>
    %c0_3 = arith.constant 0 : index
    %c0_4 = arith.constant 0 : index
    %2 = vector.load %arg3[%c0_3, %c0_4] : memref<1x8xf32, #tpu.memory_space<vmem>>, vector<1x8xf32>
    %3 = arith.mulf %0, %0 : vector<16x32xf32>
    %cst = arith.constant dense<0.000000e+00> : vector<16xf32>
    %4 = vector.multi_reduction <add>, %3, %cst [1] : vector<16x32xf32> to vector<16xf32>
    %5 = vector.shape_cast %4 : vector<16xf32> to vector<16x1xf32>
    %cst_5 = arith.constant dense<0.000000e+00> : vector<16x8xf32>
    %6 = tpu.matmul %0, %1, %cst_5 {dimension_numbers = #tpu.dot_dimension_numbers<[1], [1], [0], [0], [0, 0, 1, 0], [], []>} : vector<16x32xf32>, vector<8x32xf32>, vector<16x8xf32> -> vector<16x8xf32>
    %7 = vector.broadcast %5 : vector<16x1xf32> to vector<16x8xf32>
    %8 = vector.broadcast %2 : vector<1x8xf32> to vector<16x8xf32>
    %9 = arith.addf %7, %8 : vector<16x8xf32>
    %cst_6 = arith.constant 2.000000e+00 : f32
    %10 = vector.broadcast %cst_6 : f32 to vector<16x8xf32>
    %11 = arith.mulf %10, %6 : vector<16x8xf32>
    %12 = arith.subf %9, %11 : vector<16x8xf32>
    %cst_7 = arith.constant 0.000000e+00 : f32
    %13 = vector.broadcast %cst_7 : f32 to vector<16x8xf32>
    %14 = arith.maximumf %12, %13 : vector<16x8xf32>
    %15 = math.sqrt %14 : vector<16x8xf32>
    %cst_8 = arith.constant 0.000000e+00 : f32
    %16 = vector.broadcast %cst_8 : f32 to vector<16x8xf32>
    %17 = arith.subf %16, %15 : vector<16x8xf32>
    %cst_9 = arith.constant dense<0xFF800000> : vector<16xf32>
    %18 = vector.multi_reduction <maximumf>, %17, %cst_9 [1] : vector<16x8xf32> to vector<16xf32>
    %19 = vector.shape_cast %18 : vector<16xf32> to vector<16x1xf32>
    %20 = vector.broadcast %19 : vector<16x1xf32> to vector<16x8xf32>
    %21 = arith.subf %17, %20 : vector<16x8xf32>
    %22 = math.exp %21 : vector<16x8xf32>
    %cst_10 = arith.constant dense<0.000000e+00> : vector<16xf32>
    %23 = vector.multi_reduction <add>, %22, %cst_10 [1] : vector<16x8xf32> to vector<16xf32>
    %24 = vector.shape_cast %23 : vector<16xf32> to vector<16x1xf32>
    %25 = tpu.reciprocal %24 {approx = true} : vector<16x1xf32> -> vector<16x1xf32>
    %26 = vector.broadcast %25 : vector<16x1xf32> to vector<16x8xf32>
    %27 = arith.mulf %22, %26 : vector<16x8xf32>
    %cst_11 = arith.constant 5.000000e-01 : f32
    %28 = vector.broadcast %cst_11 : f32 to vector<16x8xf32>
    %29 = arith.cmpf olt, %27, %28 : vector<16x8xf32>
    %cst_12 = arith.constant 0.000000e+00 : f32
    %30 = vector.broadcast %cst_12 : f32 to vector<16x8xf32>
    %31 = arith.select %29, %30, %27 : vector<16x8xi1>, vector<16x8xf32>
    %c0_13 = arith.constant 0 : index
    %c0_14 = arith.constant 0 : index
    %32 = vector.load %arg4[%c0_13, %c0_14] : memref<16x8xf32, #tpu.memory_space<vmem>>, vector<16x8xf32>
    tpu.vector_store %arg4[%c0_13, %c0_14], %31 {strides = array<i32>} : memref<16x8xf32, #tpu.memory_space<vmem>>, vector<16x8xf32>,
    return
  }
  func.func @transform_0(%arg0: i32) -> (i32, i32) {
    %c0_i32 = arith.constant 0 : i32
    %c0_i32_0 = arith.constant 0 : i32
    return %arg0, %c0_i32 : i32, i32
  }
  func.func @transform_1(%arg0: i32) -> (i32, i32) {
    %c0_i32 = arith.constant 0 : i32
    %c0_i32_0 = arith.constant 0 : i32
    %c0_i32_1 = arith.constant 0 : i32
    return %c0_i32, %c0_i32_0 : i32, i32
  }
  func.func @transform_2(%arg0: i32) -> (i32, i32) {
    %c0_i32 = arith.constant 0 : i32
    %c0_i32_0 = arith.constant 0 : i32
    %c0_i32_1 = arith.constant 0 : i32
    return %c0_i32, %c0_i32_0 : i32, i32
  }
  func.func @transform_3(%arg0: i32) -> (i32, i32) {
    %c0_i32 = arith.constant 0 : i32
    %c0_i32_0 = arith.constant 0 : i32
    return %arg0, %c0_i32 : i32, i32
  }
}

</mosaic_0001>

<llo_original>
// kernel: tpu_custom_call.1
$region0: #{tpu_custom_call.1}
  #allocation0 [shape = 'u32[]', space=smem, size = 0x4, offset = 0x4, fixed_abs, tag = 'smem constant byte address 0x4 - core index']
  #allocation1 [shape = 'u32[144,128]{1,0:T(1,128)}', space=vmem, size = 0x12000, scoped, tag = 'internal scratch']
  %s0 = inlined_call_operand.hbm [shape: f32[16,32], index: 0, kind: input, shape index: {}]
  %s1 = inlined_call_operand.hbm [shape: f32[8,32], index: 1, kind: input, shape index: {}]
  %s2 = inlined_call_operand.vmem [shape: f32[1,8], index: 2, kind: input, shape index: {}]
  %s3 = inlined_call_operand.vmem [shape: f32[16,8], index: 3, kind: output, shape index: {}]
  %s4 = sld [smem:[#allocation0]]
  $region30: #{tpu_custom_call.1} parent=0
    _
  %s6 = ssub.s32 1, %s4
  %s7 = scalar_select 0, %s6, %s4
  $region1: #{tpu_custom_call.1} parent=0
    #allocation2 [shape = 'u8[8192]{0}', space=vmem, size = 0x2000, scoped, tag = 'input window, operand 0, single buffered']
    #allocation3 [shape = 's32[1]{0}', space=sflag, size = 0x4, scoped, tag = 'scoped memory for tpu_custom_call.1']
    #allocation4 [shape = 'u8[4096]{0}', space=vmem, size = 0x1000, scoped, tag = 'input window, operand 1, single buffered']
    #allocation5 [shape = 's32[1]{0}', space=sflag, size = 0x4, scoped, tag = 'scoped memory for tpu_custom_call.1']
    %8 = vsyncpa [#allocation3], 0
    %9 = vsyncpa [#allocation5], 0
    // Predicated region
    $region2: #{tpu_custom_call.1} parent=1 // pred_check
      _
    $region3: #{tpu_custom_call.1} parent=1 // pred_check_branch
      %11 = sbr.rel (0) target = $region5
    $region4: #{tpu_custom_call.1} parent=1 // pred_region
      %s13 = ssub.s32 256, 256
      %14 = vsyncadd [#allocation3], %s13
      %s15 = sshll.u32 [#allocation2], 4
      %s16 = int_to_ptr.vmem [resolvable:$true] %s15
      %21 = dma.hbm_to_vmem [thread:$0]  %s0, 256, %s16, [#allocation3], 128, 128, 8
    $region5: #{tpu_custom_call.1} parent=1 // pred_fallthru
      _
    // Predicated region
    $region6: #{tpu_custom_call.1} parent=1 // pred_check
      _
    $region7: #{tpu_custom_call.1} parent=1 // pred_check_branch
      %23 = sbr.rel (0) target = $region9
    $region8: #{tpu_custom_call.1} parent=1 // pred_region
      %s25 = ssub.s32 128, 128
      %26 = vsyncadd [#allocation5], %s25
      %s28 = sshll.u32 [#allocation4], 4
      %s29 = int_to_ptr.vmem [resolvable:$true] %s28
      %31 = dma.hbm_to_vmem [thread:$0]  %s1, 128, %s29, [#allocation5]
    $region9: #{tpu_custom_call.1} parent=1 // pred_fallthru
      _
    // Predicated region
    $region10: #{tpu_custom_call.1} parent=1 // pred_check
      _
    $region11: #{tpu_custom_call.1} parent=1 // pred_check_branch
      %33 = sbr.rel (0) target = $region13
    $region12: #{tpu_custom_call.1} parent=1 // pred_region
      _
    $region13: #{tpu_custom_call.1} parent=1 // pred_fallthru
      _
    // Predicated region
    $region14: #{tpu_custom_call.1} parent=1 // pred_check
      _
    $region15: #{tpu_custom_call.1} parent=1 // pred_check_branch
      %35 = sbr.rel (0) target = $region17
    $region16: #{tpu_custom_call.1} parent=1 // pred_region
      %36 = dma.done [#allocation3], 256
    $region17: #{tpu_custom_call.1} parent=1 // pred_fallthru
      _
    // Predicated region
    $region18: #{tpu_custom_call.1} parent=1 // pred_check
      _
    $region19: #{tpu_custom_call.1} parent=1 // pred_check_branch
      %38 = sbr.rel (0) target = $region21
    $region20: #{tpu_custom_call.1} parent=1 // pred_region
      %39 = dma.done [#allocation5], 128
    $region21: #{tpu_custom_call.1} parent=1 // pred_fallthru
      _
    %v40 = vld [vmem:[#allocation2] sm:$0xff]
    %v41 = vld [vmem:[#allocation2 + $0x8] sm:$0xff]
    %v42 = vld [vmem:[#allocation4] sm:$0xff]
    %v43 = vld [vmem:[%s2] sm:$0x1]
    %v44 = vmul.f32 %v40, %v40
    %v45 = vmul.f32 %v41, %v41
    %vm46 = vcmask 261120
    %v47 = vsel %vm46, %v44, 0.0
    %48 = vadd.xlane.f32.xlu0 %v47
    %v49 = vpop.xlane.xlu0 %48
    %v50 = vsel %vm46, %v45, 0.0
    %51 = vadd.xlane.f32.xlu0 %v50
    %v52 = vpop.xlane.xlu0 %51
    %v54 = vsel %vm46, %v40, 0
    %v57 = vsel %vm46, %v41, 0
    %v60 = vsel %vm46, %v42, 0
    %62 = vmatprep.subr.mxu0 0.0
    %63 = vmatpush1.xpose.msra.mxu0 %v60
    %64 = vmatprep.subr.mxu0 0.0
    %65 = vmatpush1.xpose.msra.mxu0 0.0
    %66 = vmatprep.subr.mxu0 0.0
    %67 = vmatpush1.xpose.msra.mxu0 0.0
    %68 = vmatprep.subr.mxu0 0.0
    %69 = vmatpush1.xpose.msra.mxu0 0.0
    %70 = vmatprep.subr.mxu0 0.0
    %71 = vmatpush1.xpose.msra.mxu0 0.0
    %72 = vmatprep.subr.mxu0 0.0
    %73 = vmatpush1.xpose.msra.mxu0 0.0
    %74 = vmatprep.subr.mxu0 0.0
    %75 = vmatpush1.xpose.msra.mxu0 0.0
    %76 = vmatprep.subr.mxu0 0.0
    %77 = vmatpush1.xpose.msra.mxu0 0.0
    %78 = vmatprep.subr.mxu0 0.0
    %79 = vmatpush1.xpose.msra.mxu0 0.0
    %80 = vmatprep.subr.mxu0 0.0
    %81 = vmatpush1.xpose.msra.mxu0 0.0
    %82 = vmatprep.subr.mxu0 0.0
    %83 = vmatpush1.xpose.msra.mxu0 0.0
    %84 = vmatprep.subr.mxu0 0.0
    %85 = vmatpush1.xpose.msra.mxu0 0.0
    %86 = vmatprep.subr.mxu0 0.0
    %87 = vmatpush1.xpose.msra.mxu0 0.0
    %88 = vmatprep.subr.mxu0 0.0
    %89 = vmatpush1.xpose.msra.mxu0 0.0
    %90 = vmatprep.subr.mxu0 0.0
    %91 = vmatpush1.xpose.msra.mxu0 0.0
    %92 = vmatprep.subr.mxu0 0.0
    %93 = vmatpush1.xpose.msra.mxu0 0.0
    %94 = vmatprep.subr.mxu0 0.0
    %95 = vmatpush1.xpose.msra.mxu0 0.0
    %96 = vmatprep.subr.mxu0 0.0
    %97 = vmatpush1.xpose.msra.mxu0 0.0
    %98 = vmatprep.subr.mxu0 0.0
    %99 = vmatpush1.xpose.msra.mxu0 0.0
    %100 = vmatprep.subr.mxu0 0.0
    %101 = vmatpush1.xpose.msra.mxu0 0.0
    %102 = vmatprep.subr.mxu0 0.0
    %103 = vmatpush1.xpose.msra.mxu0 0.0
    %104 = vmatprep.subr.mxu0 0.0
    %105 = vmatpush1.xpose.msra.mxu0 0.0
    %106 = vmatprep.subr.mxu0 0.0
    %107 = vmatpush1.xpose.msra.mxu0 0.0
    %108 = vmatprep.subr.mxu0 0.0
    %109 = vmatpush1.xpose.msra.mxu0 0.0
    %110 = vmatprep.subr.mxu0 0.0
    %111 = vmatpush1.xpose.msra.mxu0 0.0
    %112 = vmatprep.subr.mxu0 0.0
    %113 = vmatpush1.xpose.msra.mxu0 0.0
    %114 = vmatprep.subr.mxu0 0.0
    %115 = vmatpush1.xpose.msra.mxu0 0.0
    %116 = vmatprep.subr.mxu0 0.0
    %117 = vmatpush1.xpose.msra.mxu0 0.0
    %118 = vmatprep.subr.mxu0 0.0
    %119 = vmatpush1.xpose.msra.mxu0 0.0
    %120 = vmatprep.subr.mxu0 0.0
    %121 = vmatpush1.xpose.msra.mxu0 0.0
    %122 = vmatprep.subr.mxu0 0.0
    %123 = vmatpush1.xpose.msra.mxu0 0.0
    %124 = vmatprep.subr.mxu0 0.0
    %125 = vmatpush1.xpose.msra.mxu0 0.0
    %126 = vmatprep.mubr.f32.mxu0 0.0
    %127 = vmatmul.mubr.f32.gmra.mrb[0].mxu0 %v54
    %v128 = vpop.f32.mrb[0].mxu0
    %v129 = vadd.f32 0.0, %v128
    %v130 = vpop.f32.mrb[0].mxu0
    %131 = vmatprep.mubr.f32.mxu0 0.0
    %132 = vmatmul.mubr.f32.gmra.mrb[0].mxu0 %v57
    %v133 = vpop.f32.mrb[0].mxu0
    %v134 = vadd.f32 0.0, %v133
    %v135 = vpop.f32.mrb[0].mxu0
    %136 = vdwg.mxu0
    %v138 = vlaneseq
    %v139 = vshrl.u32 %v138, 7
    %v140 = vsub.s32 0, %v139
    %v141 = vrot.slane %v43, %v140
    %v143 = vadd.f32 %v49, %v141
    %v144 = vadd.f32 %v52, %v141
    %v145 = vmul.f32 %v129, 2.0
    %v146 = vmul.f32 %v134, 2.0
    %v147 = vsub.f32 %v143, %v145
    %v148 = vsub.f32 %v144, %v146
    %v149 = vmax.f32 %v147, 0.0
    %v150 = vmax.f32 %v148, 0.0
    %v151 = vrsqrt.pop %v149
    %v152 = vmul.f32 %v149, %v151
    %vm153 = vcmp.eq.f32.partialorder %v149, inf
    %v154 = vsel %vm153, %v149, %v152
    %vm155 = vcmp.eq.f32.partialorder %v149, 0.0
    %v156 = vand.u32 %v149, 2147483648
    %v157 = vsel %vm155, %v156, %v154
    %v158 = vrsqrt.pop %v150
    %v159 = vmul.f32 %v150, %v158
    %vm160 = vcmp.eq.f32.partialorder %v150, inf
    %v161 = vsel %vm160, %v150, %v159
    %vm162 = vcmp.eq.f32.partialorder %v150, 0.0
    %v163 = vand.u32 %v150, 2147483648
    %v164 = vsel %vm162, %v163, %v161
    %v165 = vsub.f32 0.0, %v157
    %v166 = vsub.f32 0.0, %v164
    %vm167 = vcmask 64512
    %v168 = vsel %vm167, %v165, -inf
    %169 = vmax.xlane.f32.xlu0 %v168
    %v170 = vpop.xlane.xlu0 %169
    %v171 = vsel %vm167, %v166, -inf
    %172 = vmax.xlane.f32.xlu0 %v171
    %v173 = vpop.xlane.xlu0 %172
    %v174 = vsub.f32 %v165, %v170
    %v175 = vsub.f32 %v166, %v173
    %v176 = vmul.f32 %v174, 1.442695
    %v177 = vpow.pop %v176
    %v178 = vmul.f32 %v175, 1.442695
    %v179 = vpow.pop %v178
    %v180 = vsel %vm167, %v177, 0.0
    %181 = vadd.xlane.f32.xlu0 %v180
    %v182 = vpop.xlane.xlu0 %181
    %v183 = vsel %vm167, %v179, 0.0
    %184 = vadd.xlane.f32.xlu0 %v183
    %v185 = vpop.xlane.xlu0 %184
    %v186 = vrcp.pop %v182
    %v187 = vrcp.pop %v185
    %v188 = vmul.f32 %v177, %v186
    %v189 = vmul.f32 %v179, %v187
    %vm190 = vcmp.lt.f32.partialorder %v188, 0.5
    %vm191 = vcmp.lt.f32.partialorder %v189, 0.5
    %v192 = vsel %vm190, 0.0, %v188
    %v193 = vsel %vm191, 0.0, %v189
    %194 = vst.msk [vmem:[%s3] sm:$0xff] %vm167, %v192
    %195 = vst.msk [vmem:[%s3 + $0x8] sm:$0xff] %vm167, %v193
    // Predicated region
    $region22: #{tpu_custom_call.1} parent=1 // pred_check
      _
    $region23: #{tpu_custom_call.1} parent=1 // pred_check_branch
      %197 = sbr.rel (0) target = $region25
    $region24: #{tpu_custom_call.1} parent=1 // pred_region
      _
    $region25: #{tpu_custom_call.1} parent=1 // pred_fallthru
      _
    // Predicated region
    $region26: #{tpu_custom_call.1} parent=1 // pred_check
      _
    $region27: #{tpu_custom_call.1} parent=1 // pred_check_branch
      %199 = sbr.rel (0) target = $region29
    $region28: #{tpu_custom_call.1} parent=1 // pred_region
      _
    $region29: #{tpu_custom_call.1} parent=1 // pred_fallthru
      _
    %200 = vsyncpa [#allocation3], 1
    %201 = vsyncpa [#allocation5], 1

</llo_original>
